<compile_context>
chip_gen: v7x
topology: tpu7x:2x2x1
jax: 0.10.0
libtpu: 0.0.40
codegen_flags: <defaults>
</compile_context>

<pallas_src>
import functools
import numpy as np

import jax
import jax.numpy as jnp
from jax.experimental import pallas as pl
from jax.experimental.pallas import tpu as pltpu

NUM_TIMESTEPS = 1000

MAX_BLK_ROWS = 512                               # measured sweet spot for elementwise tiles
BLOCK_DATA_BUDGET_BYTES = 12 * 1024 * 1024       # per-kernel VMEM data budget (v7x-safe)
VMEM_LIMIT_BYTES = 32 * 1024 * 1024


def get_beta_schedule(beta_start=1e-4, beta_end=0.02, num_diffusion_timesteps=NUM_TIMESTEPS):
    # np.linspace in float64, then cast to float32 (matches torch .float()).
    betas = np.linspace(beta_start, beta_end, num_diffusion_timesteps, dtype=np.float64)
    return jnp.asarray(betas, dtype=jnp.float32)


def _round_up8(x: int) -> int:
    return ((x + 7) // 8) * 8


def _pick_blk_n(N: int, D: int, n_streams: int) -> int:
    """Row-block size for (N, D) elementwise/reduction kernels.

    Multiple of 8 (f32 sublane packing; bump to 16 if feeding bf16 streams), capped at
    MAX_BLK_ROWS so the grid keeps ~8 steps for DMA/compute overlap and megacore
    sharding, and sized so double-buffered streams + in-kernel f32 temporaries fit a
    v7x-safe VMEM budget.
    """
    per_row_bytes = (2 * n_streams + 2) * D * 4          # 2 buffers per stream + temp headroom
    vmem_rows = max(8, (BLOCK_DATA_BUDGET_BYTES // per_row_bytes) // 8 * 8)
    pipeline_rows = _round_up8(pl.cdiv(N, 8))            # aim for ~8 grid steps
    return max(8, min(MAX_BLK_ROWS, vmem_rows, pipeline_rows, _round_up8(N)))


# -----------------------------------------------------------------------------
# Pallas kernel 1: forward diffusion noising
#   sil_t = sils * sqrt(a) + e * sqrt(1 - a)      (per-row a, elementwise, HBM-bound)
# -----------------------------------------------------------------------------
def _noise_kernel(a_ref, sils_ref, e_ref, out_ref):
    a = a_ref[...].astype(jnp.float32)                   # (blk_n, 1) per-row alpha_bar
    sqrt_a = jnp.sqrt(a)
    sqrt_1ma = jnp.sqrt(jnp.maximum(1.0 - a, 0.0))
    x = sils_ref[...].astype(jnp.float32)
    e = e_ref[...].astype(jnp.float32)
    out_ref[...] = (x * sqrt_a + e * sqrt_1ma).astype(out_ref.dtype)


def add_noise(sils_flat, e_flat, a_col):
    """sil_t = sils * sqrt(a) + e * sqrt(1 - a);  sils/e: (N, D), a_col: (N, 1)."""
    N, D = sils_flat.shape
    blk_n = _pick_blk_n(N, D, n_streams=3)               # big streams: sils, e, out
    grid = (pl.cdiv(N, blk_n),)                          # ragged tail: OOB stores are dropped

    return pl.pallas_call(
        _noise_kernel,
        out_shape=jax.ShapeDtypeStruct((N, D), sils_flat.dtype),
        grid=grid,
        in_specs=[
            pl.BlockSpec((blk_n, 1), lambda i: (i, 0)),   # tiny per-block alpha DMA (pipelined)
            pl.BlockSpec((blk_n, D), lambda i: (i, 0)),   # sils rows
            pl.BlockSpec((blk_n, D), lambda i: (i, 0)),   # noise rows
        ],
        out_specs=pl.BlockSpec((blk_n, D), lambda i: (i, 0)),
        compiler_params=pltpu.CompilerParams(
            dimension_semantics=("parallel",),
            vmem_limit_bytes=VMEM_LIMIT_BYTES),
    )(a_col, sils_flat, e_flat)


# -----------------------------------------------------------------------------
# Pallas kernel 2: loss = (sils - preds)^2 summed over features, mean over rows
# Independent lane-dense per-block partial sums; tiny final reduction/divide in JAX.
# -----------------------------------------------------------------------------
def _loss_partial_kernel(sils_ref, preds_ref, out_ref, *, blk_n, n_rows):
    d = sils_ref[...].astype(jnp.float32) - preds_ref[...].astype(jnp.float32)
    sq = d * d
    if n_rows % blk_n != 0:                               # static: only emit mask if ragged
        rows_left = n_rows - pl.program_id(0) * blk_n
        row_idx = jax.lax.broadcasted_iota(jnp.int32, sq.shape, 0)
        sq = jnp.where(row_idx < rows_left, sq, 0.0)      # drop garbage tail rows
    out_ref[...] = jnp.sum(sq, axis=0, keepdims=True).reshape(out_ref.shape)


def mse_sum_mean_loss(sils_flat, preds_flat):
    N, D = sils_flat.shape
    blk_n = _pick_blk_n(N, D, n_streams=2)                # big streams: sils, preds
    nb = pl.cdiv(N, blk_n)

    partials = pl.pallas_call(
        functools.partial(_loss_partial_kernel, blk_n=blk_n, n_rows=N),
        out_shape=jax.ShapeDtypeStruct((nb, 1, D), jnp.float32),
        grid=(nb,),
        in_specs=[
            pl.BlockSpec((blk_n, D), lambda i: (i, 0)),
            pl.BlockSpec((blk_n, D), lambda i: (i, 0)),
        ],
        out_specs=pl.BlockSpec((1, 1, D), lambda i: (i, 0, 0)),   # lane-dense partial sums
        compiler_params=pltpu.CompilerParams(
            dimension_semantics=("parallel",),
            vmem_limit_bytes=VMEM_LIMIT_BYTES),
    )(sils_flat, preds_flat)
    return jnp.sum(partials) / jnp.float32(N)


# -----------------------------------------------------------------------------
# rearrange 'n c s h w -> (n s) c h w'
# -----------------------------------------------------------------------------
def _to_rows(x):
    n0, c, s, h, w = x.shape
    if c == 1:
        # Moving a size-1 axis is a pure reshape: no transpose round trip through HBM.
        return x.reshape(n0 * s, c, h, w)
    # TODO(synk): for c>1, fuse this rearrange into the kernels' BlockSpec index_maps;
    # the external model's required (N,c,h,w) layout forces one materialization today.
    return jnp.transpose(x, (0, 2, 1, 3, 4)).reshape(n0 * s, c, h, w)


# -----------------------------------------------------------------------------
# External denoiser stub. In PyTorch, `model` is passed into forward(); it is NOT part
# of this module. Small deterministic stand-in so the branch runs end-to-end.
# -----------------------------------------------------------------------------
def init_stub_model_params(key, D):
    k1, k2 = jax.random.split(key)
    return {
        "w_sil": 1.0 + 0.02 * jax.random.normal(k1, (D,), jnp.float32),
        "w_ske": 0.02 * jax.random.normal(k2, (D,), jnp.float32),
    }


def stub_model(params, skes, sil_t, t_float):
    N = sil_t.shape[0]
    D = sil_t.shape[1] * sil_t.shape[2] * sil_t.shape[3]
    sil_flat = sil_t.reshape(N, D)
    ske_flat = skes.reshape(N, D)
    temb = jnp.sin(t_float / NUM_TIMESTEPS)[:, None]
    out = sil_flat * params["w_sil"][None, :] + ske_flat * params["w_ske"][None, :] + 0.01 * temb
    return out.reshape(sil_t.shape)


# -----------------------------------------------------------------------------
# diffgait_diffusion_branch.forward
# -----------------------------------------------------------------------------
def diffgait_diffusion_branch_forward(model_fn, skes, sils, key, betas,
                                      num_timesteps=NUM_TIMESTEPS):
    n0, c, s, h, w = sils.shape
    N, D = n0 * s, c * h * w

    sils_r = _to_rows(sils)                      # ((n s), c, h, w)
    skes_r = _to_rows(skes)

    k_e, k_t = jax.random.split(key)
    # e ~ N(0,1) like sils; i.i.d., so generate directly in the rearranged row layout.
    e_flat = jax.random.normal(k_e, (N, D), sils.dtype)

    # antithetic timestep sampling
    t_half = jax.random.randint(k_t, (N // 2 + 1,), 0, num_timesteps)
    t = jnp.concatenate([t_half, num_timesteps - t_half - 1], axis=0)[:N]

    # a = cumprod(1 - betas)[t]
    alphas_cumprod = jnp.cumprod(1.0 - betas)
    a_col = alphas_cumprod[t].reshape(N, 1).astype(jnp.float32)

    # hot path 1: noising (Pallas, elementwise, HBM-bound)
    sils_flat = sils_r.reshape(N, D)
    sil_t = add_noise(sils_flat, e_flat, a_col).reshape(N, c, h, w)

    # external denoiser (not part of this module's compute)
    preds = model_fn(skes_r, sil_t, t.astype(jnp.float32))     # (N, c, h, w)

    # hot path 2: squared-error reduction (Pallas, parallel partial sums)
    loss = mse_sum_mean_loss(sils_flat, preds.reshape(N, D))
    return loss, preds


if __name__ == "__main__":
    # Small shapes consistent with the module: (n, c, s, h, w)
    n0, c, s, h, w = 2, 2, 8, 16, 16        # -> N = n*s = 16 rows, D = c*h*w = 512
    key = jax.random.PRNGKey(0)
    k_sils, k_skes, k_model, k_fwd, k_chk = jax.random.split(key, 5)

    sils = jax.random.normal(k_sils, (n0, c, s, h, w), jnp.float32)
    skes = jax.random.normal(k_skes, (n0, c, s, h, w), jnp.float32)

    betas = get_beta_schedule()
    model_params = init_stub_model_params(k_model, c * h * w)
    model_fn = functools.partial(stub_model, model_params)

    loss, preds = diffgait_diffusion_branch_forward(model_fn, skes, sils, k_fwd, betas)
    jax.block_until_ready((loss, preds))

    N, D = n0 * s, c * h * w
    assert preds.shape == (N, c, h, w)
    assert loss.shape == () and bool(jnp.isfinite(loss))

    # --- check 1: loss kernel vs pure-JAX reference (exact path, no RNG involved)
    sils_flat = _to_rows(sils).reshape(N, D)
    ref_loss = jnp.mean(jnp.sum((sils_flat - preds.reshape(N, D)) ** 2, axis=1))
    assert jnp.allclose(loss, ref_loss, rtol=1e-4, atol=1e-4), (float(loss), float(ref_loss))

    # --- check 2: noise kernel vs formula, divisible and ragged (non-multiple-of-8) N
    for (Nc, Dc) in [(16, 512), (13, 384)]:
        kx, ke, ka = jax.random.split(jax.random.fold_in(k_chk, Nc), 3)
        x = jax.random.normal(kx, (Nc, Dc), jnp.float32)
        e = jax.random.normal(ke, (Nc, Dc), jnp.float32)
        a = jax.random.uniform(ka, (Nc, 1), jnp.float32, 0.05, 0.95)
        got = add_noise(x, e, a)
        ref = x * jnp.sqrt(a) + e * jnp.sqrt(1.0 - a)
        assert got.shape == (Nc, Dc)
        assert jnp.allclose(got, ref, rtol=1e-6, atol=1e-6)

    # --- check 3: loss kernel with a ragged N (exercises in-kernel tail-row masking)
    kx, ky = jax.random.split(jax.random.fold_in(k_chk, 999))
    x = jax.random.normal(kx, (13, 384), jnp.float32)
    y = jax.random.normal(ky, (13, 384), jnp.float32)
    got = mse_sum_mean_loss(x, y)
    ref = jnp.mean(jnp.sum((x - y) ** 2, axis=1))
    assert jnp.allclose(got, ref, rtol=1e-5, atol=1e-5), (float(got), float(ref))

    print("KERNEL_OK")
</pallas_src>

<mosaic_0001>
module attributes {stable_mosaic.version = 11 : i64} {
  func.func @_noise_kernel(%arg0: i32, %arg1: memref<8x1xf32, #tpu.memory_space<vmem>>, %arg2: memref<8x512xf32, #tpu.memory_space<vmem>>, %arg3: memref<8x512xf32, #tpu.memory_space<vmem>>, %arg4: memref<8x512xf32, #tpu.memory_space<vmem>>) attributes {dimension_semantics = [#tpu.dimension_semantics<parallel>], iteration_bounds = array<i64: 2>, scalar_prefetch = 0 : i64, scratch_operands = 0 : i64, tpu.core_type = #tpu.core_type<tc>, window_params = [{transform_indices = @transform_0, window_bounds = array<i64: 8, 1>}, {transform_indices = @transform_1, window_bounds = array<i64: 8, 512>}, {transform_indices = @transform_2, window_bounds = array<i64: 8, 512>}, {transform_indices = @transform_3, window_bounds = array<i64: 8, 512>}]} {
    %c0 = arith.constant 0 : index
    %c0_0 = arith.constant 0 : index
    %0 = vector.load %arg1[%c0, %c0_0] : memref<8x1xf32, #tpu.memory_space<vmem>>, vector<8x1xf32>
    %1 = math.sqrt %0 : vector<8x1xf32>
    %cst = arith.constant 1.000000e+00 : f32
    %2 = vector.broadcast %cst : f32 to vector<8x1xf32>
    %3 = arith.subf %2, %0 : vector<8x1xf32>
    %cst_1 = arith.constant 0.000000e+00 : f32
    %4 = vector.broadcast %cst_1 : f32 to vector<8x1xf32>
    %5 = arith.maximumf %3, %4 : vector<8x1xf32>
    %6 = math.sqrt %5 : vector<8x1xf32>
    %c0_2 = arith.constant 0 : index
    %c0_3 = arith.constant 0 : index
    %7 = vector.load %arg2[%c0_2, %c0_3] : memref<8x512xf32, #tpu.memory_space<vmem>>, vector<8x512xf32>
    %c0_4 = arith.constant 0 : index
    %c0_5 = arith.constant 0 : index
    %8 = vector.load %arg3[%c0_4, %c0_5] : memref<8x512xf32, #tpu.memory_space<vmem>>, vector<8x512xf32>
    %9 = vector.broadcast %1 : vector<8x1xf32> to vector<8x512xf32>
    %10 = arith.mulf %7, %9 : vector<8x512xf32>
    %11 = vector.broadcast %6 : vector<8x1xf32> to vector<8x512xf32>
    %12 = arith.mulf %8, %11 : vector<8x512xf32>
    %13 = arith.addf %10, %12 : vector<8x512xf32>
    %c0_6 = arith.constant 0 : index
    %c0_7 = arith.constant 0 : index
    %14 = vector.load %arg4[%c0_6, %c0_7] : memref<8x512xf32, #tpu.memory_space<vmem>>, vector<8x512xf32>
    tpu.vector_store %arg4[%c0_6, %c0_7], %13 {strides = array<i32>} : memref<8x512xf32, #tpu.memory_space<vmem>>, vector<8x512xf32>,
    return
  }
  func.func @transform_0(%arg0: i32) -> (i32, i32) {
    %c0_i32 = arith.constant 0 : i32
    %c0_i32_0 = arith.constant 0 : i32
    return %arg0, %c0_i32 : i32, i32
  }
  func.func @transform_1(%arg0: i32) -> (i32, i32) {
    %c0_i32 = arith.constant 0 : i32
    %c0_i32_0 = arith.constant 0 : i32
    return %arg0, %c0_i32 : i32, i32
  }
  func.func @transform_2(%arg0: i32) -> (i32, i32) {
    %c0_i32 = arith.constant 0 : i32
    %c0_i32_0 = arith.constant 0 : i32
    return %arg0, %c0_i32 : i32, i32
  }
  func.func @transform_3(%arg0: i32) -> (i32, i32) {
    %c0_i32 = arith.constant 0 : i32
    %c0_i32_0 = arith.constant 0 : i32
    return %arg0, %c0_i32 : i32, i32
  }
}

</mosaic_0001>

<llo_original>
// kernel: tpu_custom_call.1
$region0: #{tpu_custom_call.1}
  #allocation0 [shape = 'u32[]', space=smem, size = 0x4, offset = 0x4, fixed_abs, tag = 'smem constant byte address 0x4 - core index']
  #allocation1 [shape = 'u32[144,128]{1,0:T(1,128)}', space=vmem, size = 0x12000, scoped, tag = 'internal scratch']
  %s0 = inlined_call_operand.vmem [shape: f32[16,1], index: 0, kind: input, shape index: {}]
  %s1 = inlined_call_operand.hbm [shape: f32[16,512], index: 1, kind: input, shape index: {}]
  %s2 = inlined_call_operand.hbm [shape: f32[16,512], index: 2, kind: input, shape index: {}]
  %s3 = inlined_call_operand.hbm [shape: f32[16,512], index: 3, kind: output, shape index: {}]
  %s4 = sld [smem:[#allocation0]]
  $region53: #{tpu_custom_call.1} parent=0
    _
  %s6 = ssub.s32 1, %s4
  %s7 = scalar_select 0, %s6, %s4
  $region1: #{tpu_custom_call.1} parent=0
    #allocation2 [shape = 'u8[32768]{0}', space=vmem, size = 0x8000, scoped, tag = 'input window, operand 1']
    #allocation3 [shape = 's32[2]{0}', space=sflag, size = 0x8, scoped, tag = 'scoped memory for tpu_custom_call.1']
    #allocation4 [shape = 's32[2]{0}', space=sflag, size = 0x8, scoped, tag = 'scoped memory for tpu_custom_call.1']
    #allocation5 [shape = 'u8[32768]{0}', space=vmem, size = 0x8000, scoped, tag = 'input window, operand 2']
    #allocation6 [shape = 's32[2]{0}', space=sflag, size = 0x8, scoped, tag = 'scoped memory for tpu_custom_call.1']
    #allocation7 [shape = 'u8[32768]{0}', space=vmem, size = 0x8000, scoped, tag = 'output window, operand 0']
    %8 = vsyncpa [#allocation3], 0
    %s9 = scalar_lea.sflag [#allocation3], 1
    %10 = vsyncpa %s9, 0
    %11 = vsyncpa [#allocation6], 0
    %s12 = scalar_lea.sflag [#allocation6], 1
    %13 = vsyncpa %s12, 0
    %14 = vsyncpa [#allocation4], 0
    %s15 = scalar_lea.sflag [#allocation4], 1
    %16 = vsyncpa %s15, 0
    loop: start=0, step=1, limit=4
    $region2: #{tpu_custom_call.1} parent=1 // loop_pre_header
      _
    $region3: #{tpu_custom_call.1} parent=1 // loop_header
      %s18 = sphi 0, %s22
      %p19 = scmp.ge.s32.totalorder %s18, 4
      %s28 = sphi 0, %s30
      %s31 = sphi 0, %s28
      %s32 = sphi 0, %s31
      %s48 = sphi 0, %s32
      %s54 = sphi 0, %s56
      %s57 = sphi 0, %s54
      %s58 = sphi 0, %s57
      %s74 = sphi 0, %s58
      %s80 = sphi 0, %s82
      %s83 = sphi 0, %s80
      %s84 = sphi 0, %s83
      %s100 = sphi 0, %s84
      %s106 = sphi 0, %s108
      %s109 = sphi 0, %s106
      %s110 = sphi 0, %s109
      %s126 = sphi 0, %s110
    $region4: #{tpu_custom_call.1} parent=1 // loop_header_branch
      %21 = sbr.rel (%p19) target = $region8
    $region5: #{tpu_custom_call.1} parent=1 // loop_body
      %s23 = ssub.s32 %s18, 1
      %s24 = ssub.s32 %s18, 2
      %s25 = sadd.s32 %s18, 1
      %s26 = ssub.s32 %s18, %s25
      %p27 = scmp.eq.s32.totalorder %s26, 0
      %s29 = sadd.s32 %s28, 1
      %s30 = scalar_select %p27, %s28, %s29
      %p33 = pneg %p27
      %p34 = scmp.eq.s32.totalorder %s18, 1
      %p35 = por %p33, %p34
      %p36 = scmp.ne.s32.totalorder %s28, %s31
      %p37 = scmp.eq.s32.totalorder %s18, 0
      %p38 = por %p36, %p37
      %p39 = scmp.ne.s32.totalorder %s28, %s31
      %p40 = scmp.eq.s32.totalorder %s23, 1
      %p41 = por %p39, %p40
      %p42 = scmp.ne.s32.totalorder %s31, %s32
      %p43 = scmp.eq.s32.totalorder %s23, 0
      %p44 = por %p42, %p43
      %p45 = scmp.ne.s32.totalorder %s31, %s32
      %p46 = scmp.eq.s32.totalorder %s24, 1
      %p47 = por %p45, %p46
      %p49 = scmp.ne.s32.totalorder %s32, %s48
      %p50 = scmp.eq.s32.totalorder %s24, 0
      %p51 = por %p49, %p50
      %s52 = ssub.s32 %s18, %s25
      %p53 = scmp.eq.s32.totalorder %s52, 0
      %s55 = sadd.s32 %s54, 1
      %s56 = scalar_select %p53, %s54, %s55
      %p59 = pneg %p53
      %p60 = scmp.eq.s32.totalorder %s18, 1
      %p61 = por %p59, %p60
      %p62 = scmp.ne.s32.totalorder %s54, %s57
      %p63 = scmp.eq.s32.totalorder %s18, 0
      %p64 = por %p62, %p63
      %p65 = scmp.ne.s32.totalorder %s54, %s57
      %p66 = scmp.eq.s32.totalorder %s23, 1
      %p67 = por %p65, %p66
      %p68 = scmp.ne.s32.totalorder %s57, %s58
      %p69 = scmp.eq.s32.totalorder %s23, 0
      %p70 = por %p68, %p69
      %p71 = scmp.ne.s32.totalorder %s57, %s58
      %p72 = scmp.eq.s32.totalorder %s24, 1
      %p73 = por %p71, %p72
      %p75 = scmp.ne.s32.totalorder %s58, %s74
      %p76 = scmp.eq.s32.totalorder %s24, 0
      %p77 = por %p75, %p76
      %s78 = ssub.s32 %s18, %s25
      %p79 = scmp.eq.s32.totalorder %s78, 0
      %s81 = sadd.s32 %s80, 1
      %s82 = scalar_select %p79, %s80, %s81
      %p85 = pneg %p79
      %p86 = scmp.eq.s32.totalorder %s18, 1
      %p87 = por %p85, %p86
      %p88 = scmp.ne.s32.totalorder %s80, %s83
      %p89 = scmp.eq.s32.totalorder %s18, 0
      %p90 = por %p88, %p89
      %p91 = scmp.ne.s32.totalorder %s80, %s83
      %p92 = scmp.eq.s32.totalorder %s23, 1
      %p93 = por %p91, %p92
      %p94 = scmp.ne.s32.totalorder %s83, %s84
      %p95 = scmp.eq.s32.totalorder %s23, 0
      %p96 = por %p94, %p95
      %p97 = scmp.ne.s32.totalorder %s83, %s84
      %p98 = scmp.eq.s32.totalorder %s24, 1
      %p99 = por %p97, %p98
      %p101 = scmp.ne.s32.totalorder %s84, %s100
      %p102 = scmp.eq.s32.totalorder %s24, 0
      %p103 = por %p101, %p102
      %s104 = ssub.s32 %s18, %s25
      %p105 = scmp.eq.s32.totalorder %s104, 0
      %s107 = sadd.s32 %s106, 1
      %s108 = scalar_select %p105, %s106, %s107
      %p111 = pneg %p105
      %p112 = scmp.eq.s32.totalorder %s18, 1
      %p113 = por %p111, %p112
      %p114 = scmp.ne.s32.totalorder %s106, %s109
      %p115 = scmp.eq.s32.totalorder %s18, 0
      %p116 = por %p114, %p115
      %p117 = scmp.ne.s32.totalorder %s106, %s109
      %p118 = scmp.eq.s32.totalorder %s23, 1
      %p119 = por %p117, %p118
      %p120 = scmp.ne.s32.totalorder %s109, %s110
      %p121 = scmp.eq.s32.totalorder %s23, 0
      %p122 = por %p120, %p121
      %p123 = scmp.ne.s32.totalorder %s109, %s110
      %p124 = scmp.eq.s32.totalorder %s24, 1
      %p125 = por %p123, %p124
      %p127 = scmp.ne.s32.totalorder %s110, %s126
      %p128 = scmp.eq.s32.totalorder %s24, 0
      %p129 = por %p127, %p128
      %p130 = scmp.le.s32.totalorder 1, %s18
      %p131 = scmp.lt.s32.totalorder %s18, 3
      %p132 = pnand %p130, %p131
      %p133 = pneg %p132
      // Predicated region
      $region9: #{tpu_custom_call.1} parent=5 // pred_check
        _
      $region10: #{tpu_custom_call.1} parent=5 // pred_check_branch
        %135 = sbr.rel (%p132) target = $region12
      $region11: #{tpu_custom_call.1} parent=5 // pred_region
        %s136 = ssub.s32 %s18, 1
      $region12: #{tpu_custom_call.1} parent=5 // pred_fallthru
        _
      %p137 = scmp.lt.s32.totalorder %s18, 2
      // Predicated region
      $region13: #{tpu_custom_call.1} parent=5 // pred_check
        %p138 = pneg %p137
      $region14: #{tpu_custom_call.1} parent=5 // pred_check_branch
        %140 = sbr.rel (%p138) target = $region16
      $region15: #{tpu_custom_call.1} parent=5 // pred_region
        // Predicated region
        $region17: #{tpu_custom_call.1} parent=15 // pred_check
          %p141 = pneg %p38
        $region18: #{tpu_custom_call.1} parent=15 // pred_check_branch
          %143 = sbr.rel (%p141) target = $region20
        $region19: #{tpu_custom_call.1} parent=15 // pred_region
          %p144 = scmp.lt.s32.totalorder %s18, 1
          %s145 = scalar_select %p144, %s18, 1
          %s146 = smul.addr %s145, 8
          %s147 = scalar_lea.vmem %s0, %s146
        $region20: #{tpu_custom_call.1} parent=15 // pred_fallthru
          _
        // Predicated region
        $region21: #{tpu_custom_call.1} parent=15 // pred_check
          %p148 = pneg %p64
        $region22: #{tpu_custom_call.1} parent=15 // pred_check_branch
          %150 = sbr.rel (%p148) target = $region24
        $region23: #{tpu_custom_call.1} parent=15 // pred_region
          %s151 = sand.u32 %s54, 1
          %s152 = scalar_lea.sflag [#allocation3], %s151
          %s153 = sand.u32 %s54, 1
          %s154 = smul.addr %s153, 32
          %s155 = scalar_lea.vmem [#allocation2], %s154
          %s157 = ssub.s32 512, 512
          %158 = vsyncadd %s152, %s157
          %s159 = smul.addr %s18, 4
          %s160 = smul.addr %s159, 128
          %s161 = scalar_lea.hbm %s1, %s160
          %s163 = sshll.u32 %s155, 4
          %s164 = int_to_ptr.vmem [resolvable:$true] %s163
          %166 = dma.hbm_to_vmem [thread:$0]  %s161, 512, %s164, %s152
        $region24: #{tpu_custom_call.1} parent=15 // pred_fallthru
          _
        // Predicated region
        $region25: #{tpu_custom_call.1} parent=15 // pred_check
          %p167 = pneg %p90
        $region26: #{tpu_custom_call.1} parent=15 // pred_check_branch
          %169 = sbr.rel (%p167) target = $region28
        $region27: #{tpu_custom_call.1} parent=15 // pred_region
          %s170 = sand.u32 %s80, 1
          %s171 = scalar_lea.sflag [#allocation6], %s170
          %s172 = sand.u32 %s80, 1
          %s173 = smul.addr %s172, 32
          %s174 = scalar_lea.vmem [#allocation5], %s173
          %s176 = ssub.s32 512, 512
          %177 = vsyncadd %s171, %s176
          %s178 = smul.addr %s18, 4
          %s179 = smul.addr %s178, 128
          %s180 = scalar_lea.hbm %s2, %s179
          %s182 = sshll.u32 %s174, 4
          %s183 = int_to_ptr.vmem [resolvable:$true] %s182
          %185 = dma.hbm_to_vmem [thread:$0]  %s180, 512, %s183, %s171
        $region28: #{tpu_custom_call.1} parent=15 // pred_fallthru
          _
      $region16: #{tpu_custom_call.1} parent=5 // pred_fallthru
        _
      %p186 = scmp.le.s32.totalorder 1, %s18
      %p187 = scmp.lt.s32.totalorder %s18, 3
      %p188 = pnand %p186, %p187
      %p189 = pneg %p188
      // Predicated region
      $region29: #{tpu_custom_call.1} parent=5 // pred_check
        _
      $region30: #{tpu_custom_call.1} parent=5 // pred_check_branch
        %191 = sbr.rel (%p188) target = $region32
      $region31: #{tpu_custom_call.1} parent=5 // pred_region
        %s192 = ssub.s32 %s18, 1
        %s193 = sand.u32 %s57, 1
        %s194 = scalar_lea.sflag [#allocation3], %s193
        %s195 = sand.u32 %s57, 1
        %s196 = smul.addr %s195, 32
        %s197 = scalar_lea.vmem [#allocation2], %s196
        // Predicated region
        $region33: #{tpu_custom_call.1} parent=31 // pred_check
          %p198 = pneg %p70
        $region34: #{tpu_custom_call.1} parent=31 // pred_check_branch
          %200 = sbr.rel (%p198) target = $region36
        $region35: #{tpu_custom_call.1} parent=31 // pred_region
          %201 = dma.done %s194, 512
        $region36: #{tpu_custom_call.1} parent=31 // pred_fallthru
          _
        %s202 = sand.u32 %s83, 1
        %s203 = scalar_lea.sflag [#allocation6], %s202
        %s204 = sand.u32 %s83, 1
        %s205 = smul.addr %s204, 32
        %s206 = scalar_lea.vmem [#allocation5], %s205
        // Predicated region
        $region37: #{tpu_custom_call.1} parent=31 // pred_check
          %p207 = pneg %p96
        $region38: #{tpu_custom_call.1} parent=31 // pred_check_branch
          %209 = sbr.rel (%p207) target = $region40
        $region39: #{tpu_custom_call.1} parent=31 // pred_region
          %210 = dma.done %s203, 512
        $region40: #{tpu_custom_call.1} parent=31 // pred_fallthru
          _
        %p211 = scmp.lt.s32.totalorder %s23, 1
        %s212 = scalar_select %p211, %s23, 1
        %s213 = smul.addr %s212, 8
        %s214 = scalar_lea.vmem %s0, %s213
        %p215 = pneg %p44
        %p216 = pneg %p41
        %s217 = sand.u32 %s57, 1
        %s218 = scalar_lea.sflag [#allocation3], %s217
        %s219 = sand.u32 %s57, 1
        %s220 = smul.addr %s219, 32
        %s221 = scalar_lea.vmem [#allocation2], %s220
        %p222 = pneg %p70
        %p223 = pneg %p67
        %s224 = sand.u32 %s83, 1
        %s225 = scalar_lea.sflag [#allocation6], %s224
        %s226 = sand.u32 %s83, 1
        %s227 = smul.addr %s226, 32
        %s228 = scalar_lea.vmem [#allocation5], %s227
        %p229 = pneg %p96
        %p230 = pneg %p93
        %p231 = pneg %p122
        %p232 = pneg %p119
        %s233 = sand.u32 %s109, 1
        %s234 = scalar_lea.sflag [#allocation4], %s233
        %s235 = sand.u32 %s109, 1
        %s236 = smul.addr %s235, 32
        %s237 = scalar_lea.vmem [#allocation7], %s236
        %p238 = scmp.lt.s32.totalorder %s23, 1
        %s239 = scalar_select %p238, %s23, 1
        %s240 = smul.addr %s239, 8
        %s241 = scalar_lea.vmem %s0, %s240
        %v242 = vld [vmem:[%s241] sm:$0xff]
        %v243 = vrsqrt.pop %v242
        %v244 = vmul.f32 %v242, %v243
        %vm245 = vcmp.eq.f32.partialorder %v242, inf
        %v246 = vsel %vm245, %v242, %v244
        %vm247 = vcmp.eq.f32.partialorder %v242, 0.0
        %v248 = vand.u32 %v242, 2147483648
        %v249 = vsel %vm247, %v248, %v246
        %v250 = vsub.f32 1.0, %v242
        %v251 = vmax.f32 %v250, 0.0
        %v252 = vrsqrt.pop %v251
        %v253 = vmul.f32 %v251, %v252
        %vm254 = vcmp.eq.f32.partialorder %v251, inf
        %v255 = vsel %vm254, %v251, %v253
        %vm256 = vcmp.eq.f32.partialorder %v251, 0.0
        %v257 = vand.u32 %v251, 2147483648
        %v258 = vsel %vm256, %v257, %v255
        %v259 = vld [vmem:[%s197] sm:$0xff]
        %v260 = vld [vmem:[%s197 + $0x8] sm:$0xff]
        %v261 = vld [vmem:[%s197 + $0x10] sm:$0xff]
        %v262 = vld [vmem:[%s197 + $0x18] sm:$0xff]
        %v263 = vld [vmem:[%s206] sm:$0xff]
        %v264 = vld [vmem:[%s206 + $0x8] sm:$0xff]
        %v265 = vld [vmem:[%s206 + $0x10] sm:$0xff]
        %v266 = vld [vmem:[%s206 + $0x18] sm:$0xff]
        %268 = vset.pattern.permute.xlu0 0
        %269 = vperm.xlu0 %268, %v249
        %v270 = vpop.permute.xlu0 %269
        %v272 = vmul.f32 %v259, %v270
        %v273 = vmul.f32 %v260, %v270
        %v274 = vmul.f32 %v261, %v270
        %v275 = vmul.f32 %v262, %v270
        %277 = vset.pattern.permute.xlu0 0
        %278 = vperm.xlu0 %277, %v258
        %v279 = vpop.permute.xlu0 %278
        %v281 = vmul.f32 %v263, %v279
        %v282 = vmul.f32 %v264, %v279
        %v283 = vmul.f32 %v265, %v279
        %v284 = vmul.f32 %v266, %v279
        %v285 = vadd.f32 %v272, %v281
        %v286 = vadd.f32 %v273, %v282
        %v287 = vadd.f32 %v274, %v283
        %v288 = vadd.f32 %v275, %v284
        %289 = vst [vmem:[%s237] sm:$0xff] %v285
        %290 = vst [vmem:[%s237 + $0x8] sm:$0xff] %v286
        %291 = vst [vmem:[%s237 + $0x10] sm:$0xff] %v287
        %292 = vst [vmem:[%s237 + $0x18] sm:$0xff] %v288
        %s293 = sand.u32 %s109, 1
        %s294 = scalar_lea.sflag [#allocation4], %s293
        %s295 = sand.u32 %s109, 1
        %s296 = smul.addr %s295, 32
        %s297 = scalar_lea.vmem [#allocation7], %s296
        // Predicated region
        $region41: #{tpu_custom_call.1} parent=31 // pred_check
          %p298 = pneg %p119
        $region42: #{tpu_custom_call.1} parent=31 // pred_check_branch
          %300 = sbr.rel (%p298) target = $region44
        $region43: #{tpu_custom_call.1} parent=31 // pred_region
          %s302 = ssub.s32 512, 512
          %303 = vsyncadd %s294, %s302
          %s304 = smul.addr %s23, 4
          %s305 = smul.addr %s304, 128
          %s306 = scalar_lea.hbm %s3, %s305
          %s308 = sshll.u32 %s297, 4
          %s309 = int_to_ptr.vmem [resolvable:$true] %s308
          %311 = dma.vmem_to_hbm [thread:$0]  %s309, 512, %s306, %s294
        $region44: #{tpu_custom_call.1} parent=31 // pred_fallthru
          _
      $region32: #{tpu_custom_call.1} parent=5 // pred_fallthru
        _
      %p312 = scmp.le.s32.totalorder 2, %s18
      // Predicated region
      $region45: #{tpu_custom_call.1} parent=5 // pred_check
        %p313 = pneg %p312
      $region46: #{tpu_custom_call.1} parent=5 // pred_check_branch
        %315 = sbr.rel (%p313) target = $region48
      $region47: #{tpu_custom_call.1} parent=5 // pred_region
        %s316 = ssub.s32 %s18, 2
        // Predicated region
        $region49: #{tpu_custom_call.1} parent=47 // pred_check
          %p317 = pneg %p125
        $region50: #{tpu_custom_call.1} parent=47 // pred_check_branch
          %319 = sbr.rel (%p317) target = $region52
        $region51: #{tpu_custom_call.1} parent=47 // pred_region
          %s320 = sand.u32 %s110, 1
          %s321 = scalar_lea.sflag [#allocation4], %s320
          %s322 = sand.u32 %s110, 1
          %s323 = smul.addr %s322, 32
          %s324 = scalar_lea.vmem [#allocation7], %s323
          %325 = dma.done %s321, 512
        $region52: #{tpu_custom_call.1} parent=47 // pred_fallthru
          _
      $region48: #{tpu_custom_call.1} parent=5 // pred_fallthru
        _
    $region6: #{tpu_custom_call.1} parent=1 // loop_footer
      %s22 = sadd.s32 1, %s18
    $region7: #{tpu_custom_call.1} parent=1 // loop_footer_branch
      %17 = sbr.rel target = $region3
    $region8: #{tpu_custom_call.1} parent=1 // loop_exit
      _
    %326 = vsyncpa [#allocation3], 1
    %s327 = scalar_lea.sflag [#allocation3], 1
    %328 = vsyncpa %s327, 1
    %329 = vsyncpa [#allocation6], 1
    %s330 = scalar_lea.sflag [#allocation6], 1
    %331 = vsyncpa %s330, 1
    %332 = vsyncpa [#allocation4], 1
    %s333 = scalar_lea.sflag [#allocation4], 1
    %334 = vsyncpa %s333, 1

</llo_original>
